<compile_context>
chip_gen: v5e
topology: v5e:2x2
jax: 0.10.0
libtpu: 0.0.40
codegen_flags: <defaults>
</compile_context>

<pallas_src>
import functools

import jax
import jax.numpy as jnp
from jax.experimental import pallas as pl
from jax.experimental.pallas import tpu as pltpu


def _round_up(x, m):
    return (x + m - 1) // m * m


def _sublane(dtype):
    # Sublane packing: 8 rows for 4-byte, 16 for 2-byte, 32 for 1-byte dtypes.
    return {4: 8, 2: 16, 1: 32}.get(jnp.dtype(dtype).itemsize, 8)


def _vmem_capacity_bytes():
    # Per-generation VMEM: 128 MiB on v5e/v6e, 64 MiB per core on v7x.
    try:
        info = pltpu.get_tpu_info()
        cap = getattr(info, "vmem_capacity_bytes", None)
        if cap:
            return int(cap)
    except Exception:
        pass
    return 64 * 1024 * 1024  # conservative fallback (v7x-sized)


def _feature_tile(p, cap):
    """Largest multiple-of-128 tile <= cap that divides p (p is a 128-multiple)."""
    if p <= cap:
        return p
    for t in range(cap - cap % 128, 127, -128):
        if p % t == 0:
            return t
    return 128


def _footprint_bytes(block_b, block_h, block_n, nj, d_in_p, w_itemsize, x_itemsize):
    dbl = 2  # BlockSpec double-buffering on the pipelined operands
    fp = dbl * (
        block_b * d_in_p * x_itemsize        # x tile
        + d_in_p * block_h * w_itemsize      # W1 tile
        + block_h * block_n * w_itemsize     # W2 tile
        + (block_h + block_n) * 4            # f32 bias tiles
        + block_b * block_n * x_itemsize     # out tile
    )
    fp += nj * block_b * block_n * 4         # f32 accumulator scratch (single-buffered)
    fp += block_b * block_h * x_itemsize     # h-cache scratch (single-buffered)
    return fp


def _choose_block_b(B, d_in_p, block_h, block_n, nj, x_dtype, w_dtype, budget):
    """Largest batch tile (sublane-aligned) whose VMEM footprint fits the budget."""
    sub = _sublane(x_dtype)
    bp_full = _round_up(max(B, 1), sub)
    cands = []
    for c in (1024, 768, 512, 384, 256, 128, 64, 32, 16, 8):
        c = _round_up(min(c, bp_full), sub)
        if c not in cands:
            cands.append(c)
    cands.sort(reverse=True)
    x_it = jnp.dtype(x_dtype).itemsize
    w_it = jnp.dtype(w_dtype).itemsize
    for bb in cands:
        if _footprint_bytes(bb, block_h, block_n, nj, d_in_p, w_it, x_it) <= budget:
            return bb
    # TODO(synk): tile D_in as an extra reduction axis for very large input dims
    # that overflow VMEM even at the minimum batch tile.
    return cands[-1]


def _ffn_kernel(x_ref, w1_ref, b1_ref, w2_ref, b2_ref, o_ref, h_ref, acc_ref):
    # Grid = (i: batch tiles, k: H tiles [reduction], j: D_out tiles).
    # k is OUTER of j: W1 block (0, k) stays resident across the j sweep and
    # the Linear1 result is computed once per (i, k), cached in h_ref.
    # x_ref:  (tb, D_in_p)   w1_ref: (D_in_p, tH)  b1_ref: (1, tH)  [f32]
    # w2_ref: (tH, tN)       b2_ref: (1, tN)       [f32]
    # o_ref:  (tb, tN)       h_ref: (tb, tH)       acc_ref: (nj, tb, tN) f32
    k = pl.program_id(1)
    j = pl.program_id(2)
    nk = pl.num_programs(1)

    @pl.when(j == 0)
    def _():
        # Linear1 chunk (MXU, f32 accumulation) + bias1 + ReLU, cached for all j.
        h = jnp.dot(x_ref[...], w1_ref[...], preferred_element_type=jnp.float32)
        h_ref[...] = jnp.maximum(h + b1_ref[...], 0.0).astype(h_ref.dtype)

    # Partial Linear2 for this (k, j) chunk; accumulate in f32.
    partial = jnp.dot(h_ref[...], w2_ref[...], preferred_element_type=jnp.float32)

    @pl.when(k == 0)
    def _():
        acc_ref[j] = partial

    @pl.when(k > 0)
    def _():
        acc_ref[j] += partial

    @pl.when(k == nk - 1)
    def _():
        # bias2 is added exactly once, at finalize.
        o_ref[...] = (acc_ref[j] + b2_ref[...]).astype(o_ref.dtype)


@functools.partial(
    jax.jit,
    static_argnames=("d_in", "d_out", "d_in_p", "block_b", "block_h", "block_n"),
)
def _ffn_pallas(x, w1p, b1p, w2p, b2p, *, d_in, d_out, d_in_p,
                block_b, block_h, block_n):
    B = x.shape[0]
    hp = w1p.shape[1]
    np_ = w2p.shape[1]
    nk = hp // block_h
    nj = np_ // block_n
    bp = _round_up(max(B, 1), block_b)
    ni = bp // block_b

    # Only x is padded per call (weights were pre-padded once in make_ffn).
    xp = jnp.pad(x, ((0, bp - B), (0, d_in_p - d_in)))

    x_items = jnp.dtype(x.dtype).itemsize
    w_items = jnp.dtype(w1p.dtype).itemsize

    # Scheduler hint reflecting actual streamed traffic.
    flops = 2 * bp * (d_in_p * hp + hp * np_)
    bytes_accessed = (
        bp * d_in_p * x_items                       # x read once
        + ni * d_in_p * hp * w_items                # W1 streamed once per batch tile
        + ni * hp * np_ * w_items                   # W2 streamed once per batch tile
        + ni * (hp + np_) * 4                       # biases
        + bp * np_ * x_items * (nk if nj > 1 else 1)  # output (revisited only if nj>1)
    )
    cost = pl.CostEstimate(flops=flops, transcendentals=0,
                           bytes_accessed=bytes_accessed)

    footprint = _footprint_bytes(block_b, block_h, block_n, nj, d_in_p,
                                 w_items, x_items)
    cap = _vmem_capacity_bytes()
    vmem_limit = max(32 * 1024 * 1024, footprint + footprint // 4)
    vmem_limit = min(vmem_limit, cap - 8 * 1024 * 1024)

    out_p = pl.pallas_call(
        _ffn_kernel,
        out_shape=jax.ShapeDtypeStruct((bp, np_), x.dtype),
        grid_spec=pltpu.PrefetchScalarGridSpec(
            num_scalar_prefetch=0,
            grid=(ni, nk, nj),
            in_specs=[
                pl.BlockSpec((block_b, d_in_p), lambda i, k, j: (i, 0)),
                pl.BlockSpec((d_in_p, block_h), lambda i, k, j: (0, k)),
                pl.BlockSpec((1, block_h), lambda i, k, j: (0, k)),
                pl.BlockSpec((block_h, block_n), lambda i, k, j: (k, j)),
                pl.BlockSpec((1, block_n), lambda i, k, j: (0, j)),
            ],
            out_specs=pl.BlockSpec((block_b, block_n), lambda i, k, j: (i, j)),
            scratch_shapes=[
                pltpu.VMEM((block_b, block_h), x.dtype),          # h cache
                pltpu.VMEM((nj, block_b, block_n), jnp.float32),  # f32 accumulator
            ],
        ),
        compiler_params=pltpu.CompilerParams(
            # j must NOT be megacore-sharded: the h-cache is only valid if one
            # core owns the whole j sweep.  i carries the cross-core parallelism.
            dimension_semantics=("parallel", "arbitrary", "arbitrary"),
            vmem_limit_bytes=int(vmem_limit),
        ),
        cost_estimate=cost,
    )(xp, w1p, b1p, w2p, b2p)

    return out_p[:B, :d_out]


def make_ffn(w1, b1, w2, b2):
    """Pads / casts the parameters once (hoisted out of the hot path) and
    returns an `apply(x)` callable computing relu(x @ w1 + b1) @ w2 + b2."""
    d_in, h = w1.shape
    h2, d_out = w2.shape
    assert h == h2 and b1.shape == (h,) and b2.shape == (d_out,)

    d_in_p = _round_up(d_in, 128)
    hp = _round_up(h, 128)
    np_ = _round_up(d_out, 128)

    # Feature tiles: divisor-based so no extra padding beyond the 128 alignment.
    block_h = _feature_tile(hp, 512)
    # Drop the j axis entirely when the padded output width is modest.
    block_n = np_ if np_ <= 2048 else _feature_tile(np_, 1024)
    nj = np_ // block_n

    # One-time weight padding / f32 bias cast (zeros contribute nothing).
    w1p = jnp.pad(w1, ((0, d_in_p - d_in), (0, hp - h)))
    w2p = jnp.pad(w2, ((0, hp - h), (0, np_ - d_out)))
    b1p = jnp.pad(b1.astype(jnp.float32), (0, hp - h)).reshape(1, hp)
    b2p = jnp.pad(b2.astype(jnp.float32), (0, np_ - d_out)).reshape(1, np_)

    def apply(x):
        assert x.ndim == 2 and x.shape[1] == d_in
        cap = _vmem_capacity_bytes()
        budget = min(cap * 3 // 4, cap - 16 * 1024 * 1024)
        block_b = _choose_block_b(x.shape[0], d_in_p, block_h, block_n, nj,
                                  x.dtype, w1p.dtype, budget)
        return _ffn_pallas(
            x, w1p, b1p, w2p, b2p,
            d_in=d_in, d_out=d_out, d_in_p=d_in_p,
            block_b=block_b, block_h=block_h, block_n=block_n,
        )

    return apply


def init_ffn_params(key, input_dim, hidden_dim, output_dim, dtype=jnp.float32):
    """Deterministic init mirroring nn.Linear shapes (stored pre-transposed)."""
    k1, k2, k3, k4 = jax.random.split(key, 4)
    bound1 = 1.0 / (input_dim ** 0.5)
    bound2 = 1.0 / (hidden_dim ** 0.5)
    w1 = jax.random.uniform(k1, (input_dim, hidden_dim), dtype, -bound1, bound1)
    b1 = jax.random.uniform(k2, (hidden_dim,), dtype, -bound1, bound1)
    w2 = jax.random.uniform(k3, (hidden_dim, output_dim), dtype, -bound2, bound2)
    b2 = jax.random.uniform(k4, (output_dim,), dtype, -bound2, bound2)
    return w1, b1, w2, b2


def _reference(x, w1, b1, w2, b2):
    return jnp.maximum(x @ w1 + b1, 0.0) @ w2 + b2


if __name__ == "__main__":
    key = jax.random.PRNGKey(0)
    kx, kp, kx2, kp2, kx3, kp3 = jax.random.split(key, 6)

    # Small case (matches the toy module dims); exercises the padding path.
    batch, input_dim, hidden_dim, output_dim = 8, 32, 64, 32
    x = jax.random.normal(kx, (batch, input_dim), jnp.float32)
    w1, b1, w2, b2 = init_ffn_params(kp, input_dim, hidden_dim, output_dim)
    ffn = make_ffn(w1, b1, w2, b2)
    out = jax.block_until_ready(ffn(x))
    ref = _reference(x, w1, b1, w2, b2)
    assert out.shape == (batch, output_dim)
    assert jnp.allclose(out, ref, atol=1e-5, rtol=1e-5)

    # Odd-shaped case exercising non-128-multiple dims and masked tails.
    batch2, in2, hid2, out2 = 200, 160, 384, 192
    x2 = jax.random.normal(kx2, (batch2, in2), jnp.float32)
    w1b, b1b, w2b, b2b = init_ffn_params(kp2, in2, hid2, out2)
    ffn2 = make_ffn(w1b, b1b, w2b, b2b)
    y2 = jax.block_until_ready(ffn2(x2))
    ref2 = _reference(x2, w1b, b1b, w2b, b2b)
    assert y2.shape == (batch2, out2)
    assert jnp.allclose(y2, ref2, atol=1e-4, rtol=1e-4)

    # Larger case that actually exercises the H-reduction axis (nk > 1), the
    # D_out tiling (nj > 1), the h-cache reuse across j and the accumulator.
    batch3, in3, hid3, out3 = 64, 256, 1024, 2304
    x3 = jax.random.normal(kx3, (batch3, in3), jnp.float32)
    w1c, b1c, w2c, b2c = init_ffn_params(kp3, in3, hid3, out3)
    ffn3 = make_ffn(w1c, b1c, w2c, b2c)
    y3 = jax.block_until_ready(ffn3(x3))
    ref3 = _reference(x3, w1c, b1c, w2c, b2c)
    assert y3.shape == (batch3, out3)
    assert jnp.allclose(y3, ref3, atol=2e-4, rtol=2e-4)

    print("KERNEL_OK")
</pallas_src>

<mosaic_0001>
module attributes {stable_mosaic.version = 11 : i64} {
  func.func @_ffn_kernel(%arg0: i32, %arg1: i32, %arg2: i32, %arg3: memref<8x128xf32, #tpu.memory_space<vmem>>, %arg4: memref<128x128xf32, #tpu.memory_space<vmem>>, %arg5: memref<1x128xf32, #tpu.memory_space<vmem>>, %arg6: memref<128x128xf32, #tpu.memory_space<vmem>>, %arg7: memref<1x128xf32, #tpu.memory_space<vmem>>, %arg8: memref<8x128xf32, #tpu.memory_space<vmem>>, %arg9: memref<8x128xf32, #tpu.memory_space<vmem>>, %arg10: memref<1x8x128xf32, #tpu.memory_space<vmem>>) attributes {dimension_semantics = [#tpu.dimension_semantics<parallel>, #tpu.dimension_semantics<arbitrary>, #tpu.dimension_semantics<arbitrary>], iteration_bounds = array<i64: 1, 1, 1>, scalar_prefetch = 0 : i64, scratch_operands = 2 : i64, tpu.core_type = #tpu.core_type<tc>, window_params = [{transform_indices = @transform_0, window_bounds = array<i64: 8, 128>}, {transform_indices = @transform_1, window_bounds = array<i64: 128, 128>}, {transform_indices = @transform_2, window_bounds = array<i64: 1, 128>}, {transform_indices = @transform_3, window_bounds = array<i64: 128, 128>}, {transform_indices = @transform_4, window_bounds = array<i64: 1, 128>}, {transform_indices = @transform_5, window_bounds = array<i64: 8, 128>}]} {
    %c0_i32 = arith.constant 0 : i32
    %0 = arith.cmpi eq, %arg2, %c0_i32 : i32
    %1 = arith.extui %0 : i1 to i32
    %c0_i32_0 = arith.constant 0 : i32
    %2 = arith.cmpi ne, %1, %c0_i32_0 : i32
    scf.if %2 {
      %c0_10 = arith.constant 0 : index
      %c0_11 = arith.constant 0 : index
      %15 = vector.load %arg3[%c0_10, %c0_11] : memref<8x128xf32, #tpu.memory_space<vmem>>, vector<8x128xf32>
      %c0_12 = arith.constant 0 : index
      %c0_13 = arith.constant 0 : index
      %16 = vector.load %arg4[%c0_12, %c0_13] : memref<128x128xf32, #tpu.memory_space<vmem>>, vector<128x128xf32>
      %cst_14 = arith.constant dense<0.000000e+00> : vector<8x128xf32>
      %17 = tpu.matmul %15, %16, %cst_14 {dimension_numbers = #tpu.dot_dimension_numbers<[1], [0], [0], [1], [0, 0, 1, 1], [], []>} : vector<8x128xf32>, vector<128x128xf32>, vector<8x128xf32> -> vector<8x128xf32>
      %c0_15 = arith.constant 0 : index
      %c0_16 = arith.constant 0 : index
      %18 = vector.load %arg5[%c0_15, %c0_16] : memref<1x128xf32, #tpu.memory_space<vmem>>, vector<1x128xf32>
      %19 = vector.broadcast %18 : vector<1x128xf32> to vector<8x128xf32>
      %20 = arith.addf %17, %19 : vector<8x128xf32>
      %cst_17 = arith.constant 0.000000e+00 : f32
      %21 = vector.broadcast %cst_17 : f32 to vector<8x128xf32>
      %22 = arith.maximumf %20, %21 : vector<8x128xf32>
      %c0_18 = arith.constant 0 : index
      %c0_19 = arith.constant 0 : index
      %23 = vector.load %arg9[%c0_18, %c0_19] : memref<8x128xf32, #tpu.memory_space<vmem>>, vector<8x128xf32>
      tpu.vector_store %arg9[%c0_18, %c0_19], %22 {strides = array<i32>} : memref<8x128xf32, #tpu.memory_space<vmem>>, vector<8x128xf32>,
    } else {
    }
    %c0 = arith.constant 0 : index
    %c0_1 = arith.constant 0 : index
    %3 = vector.load %arg9[%c0, %c0_1] : memref<8x128xf32, #tpu.memory_space<vmem>>, vector<8x128xf32>
    %c0_2 = arith.constant 0 : index
    %c0_3 = arith.constant 0 : index
    %4 = vector.load %arg6[%c0_2, %c0_3] : memref<128x128xf32, #tpu.memory_space<vmem>>, vector<128x128xf32>
    %cst = arith.constant dense<0.000000e+00> : vector<8x128xf32>
    %5 = tpu.matmul %3, %4, %cst {dimension_numbers = #tpu.dot_dimension_numbers<[1], [0], [0], [1], [0, 0, 1, 1], [], []>} : vector<8x128xf32>, vector<128x128xf32>, vector<8x128xf32> -> vector<8x128xf32>
    %c0_i32_4 = arith.constant 0 : i32
    %6 = arith.cmpi eq, %arg1, %c0_i32_4 : i32
    %7 = arith.extui %6 : i1 to i32
    %c0_i32_5 = arith.constant 0 : i32
    %8 = arith.cmpi ne, %7, %c0_i32_5 : i32
    scf.if %8 {
      %15 = arith.index_cast %arg2 : i32 to index
      %c0_10 = arith.constant 0 : index
      %c0_11 = arith.constant 0 : index
      %16 = vector.load %arg10[%15, %c0_10, %c0_11] : memref<1x8x128xf32, #tpu.memory_space<vmem>>, vector<1x8x128xf32>
      %17 = vector.shape_cast %16 : vector<1x8x128xf32> to vector<8x128xf32>
      %18 = vector.shape_cast %5 : vector<8x128xf32> to vector<1x8x128xf32>
      tpu.vector_store %arg10[%15, %c0_10, %c0_11], %18 {strides = array<i32>} : memref<1x8x128xf32, #tpu.memory_space<vmem>>, vector<1x8x128xf32>,
    } else {
    }
    %c0_i32_6 = arith.constant 0 : i32
    %9 = arith.cmpi sgt, %arg1, %c0_i32_6 : i32
    %10 = arith.extui %9 : i1 to i32
    %c0_i32_7 = arith.constant 0 : i32
    %11 = arith.cmpi ne, %10, %c0_i32_7 : i32
    scf.if %11 {
      %15 = arith.index_cast %arg2 : i32 to index
      %c0_10 = arith.constant 0 : index
      %c0_11 = arith.constant 0 : index
      %16 = vector.load %arg10[%15, %c0_10, %c0_11] : memref<1x8x128xf32, #tpu.memory_space<vmem>>, vector<1x8x128xf32>
      %17 = vector.shape_cast %16 : vector<1x8x128xf32> to vector<8x128xf32>
      %18 = arith.addf %17, %5 : vector<8x128xf32>
      %19 = arith.index_cast %arg2 : i32 to index
      %c0_12 = arith.constant 0 : index
      %c0_13 = arith.constant 0 : index
      %20 = vector.load %arg10[%19, %c0_12, %c0_13] : memref<1x8x128xf32, #tpu.memory_space<vmem>>, vector<1x8x128xf32>
      %21 = vector.shape_cast %20 : vector<1x8x128xf32> to vector<8x128xf32>
      %22 = vector.shape_cast %18 : vector<8x128xf32> to vector<1x8x128xf32>
      tpu.vector_store %arg10[%19, %c0_12, %c0_13], %22 {strides = array<i32>} : memref<1x8x128xf32, #tpu.memory_space<vmem>>, vector<1x8x128xf32>,
    } else {
    }
    %c0_i32_8 = arith.constant 0 : i32
    %12 = arith.cmpi eq, %arg1, %c0_i32_8 : i32
    %13 = arith.extui %12 : i1 to i32
    %c0_i32_9 = arith.constant 0 : i32
    %14 = arith.cmpi ne, %13, %c0_i32_9 : i32
    scf.if %14 {
      %15 = arith.index_cast %arg2 : i32 to index
      %c0_10 = arith.constant 0 : index
      %c0_11 = arith.constant 0 : index
      %16 = vector.load %arg10[%15, %c0_10, %c0_11] : memref<1x8x128xf32, #tpu.memory_space<vmem>>, vector<1x8x128xf32>
      %17 = vector.shape_cast %16 : vector<1x8x128xf32> to vector<8x128xf32>
      %c0_12 = arith.constant 0 : index
      %c0_13 = arith.constant 0 : index
      %18 = vector.load %arg7[%c0_12, %c0_13] : memref<1x128xf32, #tpu.memory_space<vmem>>, vector<1x128xf32>
      %19 = vector.broadcast %18 : vector<1x128xf32> to vector<8x128xf32>
      %20 = arith.addf %17, %19 : vector<8x128xf32>
      %c0_14 = arith.constant 0 : index
      %c0_15 = arith.constant 0 : index
      %21 = vector.load %arg8[%c0_14, %c0_15] : memref<8x128xf32, #tpu.memory_space<vmem>>, vector<8x128xf32>
      tpu.vector_store %arg8[%c0_14, %c0_15], %20 {strides = array<i32>} : memref<8x128xf32, #tpu.memory_space<vmem>>, vector<8x128xf32>,
    } else {
    }
    return
  }
  func.func @transform_0(%arg0: i32, %arg1: i32, %arg2: i32) -> (i32, i32) {
    %c0_i32 = arith.constant 0 : i32
    %c0_i32_0 = arith.constant 0 : i32
    return %arg0, %c0_i32 : i32, i32
  }
  func.func @transform_1(%arg0: i32, %arg1: i32, %arg2: i32) -> (i32, i32) {
    %c0_i32 = arith.constant 0 : i32
    %c0_i32_0 = arith.constant 0 : i32
    return %c0_i32, %arg1 : i32, i32
  }
  func.func @transform_2(%arg0: i32, %arg1: i32, %arg2: i32) -> (i32, i32) {
    %c0_i32 = arith.constant 0 : i32
    %c0_i32_0 = arith.constant 0 : i32
    return %c0_i32, %arg1 : i32, i32
  }
  func.func @transform_3(%arg0: i32, %arg1: i32, %arg2: i32) -> (i32, i32) {
    %c0_i32 = arith.constant 0 : i32
    return %arg1, %arg2 : i32, i32
  }
  func.func @transform_4(%arg0: i32, %arg1: i32, %arg2: i32) -> (i32, i32) {
    %c0_i32 = arith.constant 0 : i32
    %c0_i32_0 = arith.constant 0 : i32
    return %c0_i32, %arg2 : i32, i32
  }
  func.func @transform_5(%arg0: i32, %arg1: i32, %arg2: i32) -> (i32, i32) {
    %c0_i32 = arith.constant 0 : i32
    return %arg0, %arg2 : i32, i32
  }
}

</mosaic_0001>

<llo_original>
// kernel: _ffn_pallas.1
$region0: #{_ffn_pallas.1}
  #allocation0 [shape = 'u32[]', space=smem, size = 0x4, offset = 0x4, fixed_abs, tag = 'smem constant byte address 0x4 - core index']
  #allocation1 [shape = 'u32[72,128]{1,0:T(1,128)}', space=vmem, size = 0x9000, scoped, tag = 'internal scratch']
  #allocation2 [shape = 'f32[8,128]{1,0:T(8,128)}', space=vmem, size = 0x1000, scoped, tag = 'scratch operand']
  #allocation3 [shape = 'f32[1,8,128]{2,1,0:T(8,128)}', space=vmem, size = 0x1000, scoped, tag = 'scratch operand']
  %s0 = inlined_call_operand.vmem [shape: f32[8,128], index: 0, kind: input, shape index: {}]
  %s1 = inlined_call_operand.hbm [shape: f32[128,128], index: 1, kind: input, shape index: {}]
  %s2 = inlined_call_operand.vmem [shape: f32[1,128], index: 2, kind: input, shape index: {}]
  %s3 = inlined_call_operand.hbm [shape: f32[128,128], index: 3, kind: input, shape index: {}]
  %s4 = inlined_call_operand.vmem [shape: f32[1,128], index: 4, kind: input, shape index: {}]
  %s5 = inlined_call_operand.hbm [shape: f32[8,128], index: 5, kind: output, shape index: {}]
  %s6 = sld [smem:[#allocation0]]
  $region54: #{_ffn_pallas.1} parent=0
    _
  %s8 = ssub.s32 1, %s6
  %s9 = scalar_select 0, %s8, %s6
  $region1: #{_ffn_pallas.1} parent=0
    #allocation4 [shape = 'u8[65536]{0}', space=vmem, size = 0x10000, scoped, tag = 'input window, operand 1, single buffered']
    #allocation5 [shape = 's32[1]{0}', space=sflag, size = 0x4, scoped, tag = 'scoped memory for _ffn_pallas.1']
    #allocation6 [shape = 's32[1]{0}', space=sflag, size = 0x4, scoped, tag = 'scoped memory for _ffn_pallas.1']
    #allocation7 [shape = 'u8[65536]{0}', space=vmem, size = 0x10000, scoped, tag = 'input window, operand 3, single buffered']
    #allocation8 [shape = 's32[1]{0}', space=sflag, size = 0x4, scoped, tag = 'scoped memory for _ffn_pallas.1']
    #allocation9 [shape = 'u8[4096]{0}', space=vmem, size = 0x1000, scoped, tag = 'output window, operand 0, single buffered']
    %10 = vsyncpa [#allocation5], 0
    %11 = vsyncpa [#allocation8], 0
    %12 = vsyncpa [#allocation6], 0
    // Predicated region
    $region2: #{_ffn_pallas.1} parent=1 // pred_check
      _
    $region3: #{_ffn_pallas.1} parent=1 // pred_check_branch
      %14 = sbr.rel (0) target = $region5
    $region4: #{_ffn_pallas.1} parent=1 // pred_region
      _
    $region5: #{_ffn_pallas.1} parent=1 // pred_fallthru
      _
    // Predicated region
    $region6: #{_ffn_pallas.1} parent=1 // pred_check
      _
    $region7: #{_ffn_pallas.1} parent=1 // pred_check_branch
      %16 = sbr.rel (0) target = $region9
    $region8: #{_ffn_pallas.1} parent=1 // pred_region
      %18 = vsyncadd [#allocation5], 0
      %s19 = sshll.u32 %s1, 4
      %s20 = int_to_ptr.hbm [resolvable:$true] %s19
      %s21 = sshll.u32 [#allocation4], 4
      %s22 = int_to_ptr.vmem [resolvable:$true] %s21
      %27 = dma.hbm_to_vmem [thread:$0]  %s20, 2048, %s22, [#allocation5], 128, 128, 8
    $region9: #{_ffn_pallas.1} parent=1 // pred_fallthru
      _
    // Predicated region
    $region10: #{_ffn_pallas.1} parent=1 // pred_check
      _
    $region11: #{_ffn_pallas.1} parent=1 // pred_check_branch
      %29 = sbr.rel (0) target = $region13
    $region12: #{_ffn_pallas.1} parent=1 // pred_region
      _
    $region13: #{_ffn_pallas.1} parent=1 // pred_fallthru
      _
    // Predicated region
    $region14: #{_ffn_pallas.1} parent=1 // pred_check
      _
    $region15: #{_ffn_pallas.1} parent=1 // pred_check_branch
      %31 = sbr.rel (0) target = $region17
    $region16: #{_ffn_pallas.1} parent=1 // pred_region
      %33 = vsyncadd [#allocation8], 0
      %s34 = sshll.u32 %s3, 4
      %s35 = int_to_ptr.hbm [resolvable:$true] %s34
      %s36 = sshll.u32 [#allocation7], 4
      %s37 = int_to_ptr.vmem [resolvable:$true] %s36
      %42 = dma.hbm_to_vmem [thread:$0]  %s35, 2048, %s37, [#allocation8], 128, 128, 8
    $region17: #{_ffn_pallas.1} parent=1 // pred_fallthru
      _
    // Predicated region
    $region18: #{_ffn_pallas.1} parent=1 // pred_check
      _
    $region19: #{_ffn_pallas.1} parent=1 // pred_check_branch
      %44 = sbr.rel (0) target = $region21
    $region20: #{_ffn_pallas.1} parent=1 // pred_region
      _
    $region21: #{_ffn_pallas.1} parent=1 // pred_fallthru
      _
    // Predicated region
    $region22: #{_ffn_pallas.1} parent=1 // pred_check
      _
    $region23: #{_ffn_pallas.1} parent=1 // pred_check_branch
      %46 = sbr.rel (0) target = $region25
    $region24: #{_ffn_pallas.1} parent=1 // pred_region
      %48 = dma.done [#allocation5], 2048
    $region25: #{_ffn_pallas.1} parent=1 // pred_fallthru
      _
    // Predicated region
    $region26: #{_ffn_pallas.1} parent=1 // pred_check
      _
    $region27: #{_ffn_pallas.1} parent=1 // pred_check_branch
      %50 = sbr.rel (0) target = $region29
    $region28: #{_ffn_pallas.1} parent=1 // pred_region
      %52 = dma.done [#allocation8], 2048
    $region29: #{_ffn_pallas.1} parent=1 // pred_fallthru
      _
    %p53 = scmp.eq.s32.totalorder 0, 0
    // Predicated region
    $region30: #{_ffn_pallas.1} parent=1 // pred_check
      %p54 = pneg %p53
    $region31: #{_ffn_pallas.1} parent=1 // pred_check_branch
      %56 = sbr.rel (%p54) target = $region33
    $region32: #{_ffn_pallas.1} parent=1 // pred_region
      %v57 = vld [vmem:[%s0] sm:$0xff]
      %v58 = vld [vmem:[#allocation4] sm:$0xff]
      %v59 = vld [vmem:[#allocation4 + $0x8] sm:$0xff]
      %v60 = vld [vmem:[#allocation4 + $0x10] sm:$0xff]
      %v61 = vld [vmem:[#allocation4 + $0x18] sm:$0xff]
      %v62 = vld [vmem:[#allocation4 + $0x20] sm:$0xff]
      %v63 = vld [vmem:[#allocation4 + $0x28] sm:$0xff]
      %v64 = vld [vmem:[#allocation4 + $0x30] sm:$0xff]
      %v65 = vld [vmem:[#allocation4 + $0x38] sm:$0xff]
      %v66 = vld [vmem:[#allocation4 + $0x40] sm:$0xff]
      %v67 = vld [vmem:[#allocation4 + $0x48] sm:$0xff]
      %v68 = vld [vmem:[#allocation4 + $0x50] sm:$0xff]
      %v69 = vld [vmem:[#allocation4 + $0x58] sm:$0xff]
      %v70 = vld [vmem:[#allocation4 + $0x60] sm:$0xff]
      %v71 = vld [vmem:[#allocation4 + $0x68] sm:$0xff]
      %v72 = vld [vmem:[#allocation4 + $0x70] sm:$0xff]
      %v73 = vld [vmem:[#allocation4 + $0x78] sm:$0xff]
      %v74 = vld [vmem:[%s2] sm:$0x1]
      %v76 = vperm.slane %v74, 0
      %78 = vmatpush.msra.mxu0 %v73
      %79 = vmatpush.msra.mxu0 %v72
      %80 = vmatpush.msra.mxu0 %v71
      %81 = vmatpush.msra.mxu0 %v70
      %82 = vmatpush.msra.mxu0 %v69
      %83 = vmatpush.msra.mxu0 %v68
      %84 = vmatpush.msra.mxu0 %v67
      %85 = vmatpush.msra.mxu0 %v66
      %86 = vmatpush.msra.mxu0 %v65
      %87 = vmatpush.msra.mxu0 %v64
      %88 = vmatpush.msra.mxu0 %v63
      %89 = vmatpush.msra.mxu0 %v62
      %90 = vmatpush.msra.mxu0 %v61
      %91 = vmatpush.msra.mxu0 %v60
      %92 = vmatpush.msra.mxu0 %v59
      %93 = vmatpush.msra.mxu0 %v58
      %94 = vmatmul.f32.gmra.mxu0 %v57
      %v95 = vpop.f32.mrf.mxu0
      %v96 = vadd.f32 %v76, %v95
      %97 = vdwg.mxu0
      %v98 = vmax.f32 %v96, 0.0
      %99 = vst [vmem:[#allocation2] sm:$0xff] %v98
    $region33: #{_ffn_pallas.1} parent=1 // pred_fallthru
      _
    %v100 = vld [vmem:[#allocation2] sm:$0xff]
    %v101 = vld [vmem:[#allocation7] sm:$0xff]
    %v102 = vld [vmem:[#allocation7 + $0x8] sm:$0xff]
    %v103 = vld [vmem:[#allocation7 + $0x10] sm:$0xff]
    %v104 = vld [vmem:[#allocation7 + $0x18] sm:$0xff]
    %v105 = vld [vmem:[#allocation7 + $0x20] sm:$0xff]
    %v106 = vld [vmem:[#allocation7 + $0x28] sm:$0xff]
    %v107 = vld [vmem:[#allocation7 + $0x30] sm:$0xff]
    %v108 = vld [vmem:[#allocation7 + $0x38] sm:$0xff]
    %v109 = vld [vmem:[#allocation7 + $0x40] sm:$0xff]
    %v110 = vld [vmem:[#allocation7 + $0x48] sm:$0xff]
    %v111 = vld [vmem:[#allocation7 + $0x50] sm:$0xff]
    %v112 = vld [vmem:[#allocation7 + $0x58] sm:$0xff]
    %v113 = vld [vmem:[#allocation7 + $0x60] sm:$0xff]
    %v114 = vld [vmem:[#allocation7 + $0x68] sm:$0xff]
    %v115 = vld [vmem:[#allocation7 + $0x70] sm:$0xff]
    %v116 = vld [vmem:[#allocation7 + $0x78] sm:$0xff]
    %117 = vmatpush.msra.mxu0 %v116
    %118 = vmatpush.msra.mxu0 %v115
    %119 = vmatpush.msra.mxu0 %v114
    %120 = vmatpush.msra.mxu0 %v113
    %121 = vmatpush.msra.mxu0 %v112
    %122 = vmatpush.msra.mxu0 %v111
    %123 = vmatpush.msra.mxu0 %v110
    %124 = vmatpush.msra.mxu0 %v109
    %125 = vmatpush.msra.mxu0 %v108
    %126 = vmatpush.msra.mxu0 %v107
    %127 = vmatpush.msra.mxu0 %v106
    %128 = vmatpush.msra.mxu0 %v105
    %129 = vmatpush.msra.mxu0 %v104
    %130 = vmatpush.msra.mxu0 %v103
    %131 = vmatpush.msra.mxu0 %v102
    %132 = vmatpush.msra.mxu0 %v101
    %133 = vmatmul.f32.gmra.mxu0 %v100
    %v134 = vpop.f32.mrf.mxu0
    %v135 = vadd.f32 0.0, %v134
    %136 = vdwg.mxu0
    %p137 = scmp.eq.s32.totalorder 0, 0
    // Predicated region
    $region34: #{_ffn_pallas.1} parent=1 // pred_check
      %p138 = pneg %p137
    $region35: #{_ffn_pallas.1} parent=1 // pred_check_branch
      %140 = sbr.rel (%p138) target = $region37
    $region36: #{_ffn_pallas.1} parent=1 // pred_region
      %s141 = smul.u32 0, 8
      %s142 = scalar_lea.vmem [#allocation3], %s141
      %143 = vst [vmem:[%s142] sm:$0xff] %v135
    $region37: #{_ffn_pallas.1} parent=1 // pred_fallthru
      _
    %p144 = scmp.gt.s32.totalorder 0, 0
    // Predicated region
    $region38: #{_ffn_pallas.1} parent=1 // pred_check
      %p145 = pneg %p144
    $region39: #{_ffn_pallas.1} parent=1 // pred_check_branch
      %147 = sbr.rel (%p145) target = $region41
    $region40: #{_ffn_pallas.1} parent=1 // pred_region
      %s148 = smul.u32 0, 8
      %s149 = scalar_lea.vmem [#allocation3], %s148
      %v150 = vld [vmem:[%s149] sm:$0xff]
      %v151 = vadd.f32 %v150, %v135
      %152 = vst [vmem:[%s149] sm:$0xff] %v151
    $region41: #{_ffn_pallas.1} parent=1 // pred_fallthru
      _
    // Predicated region
    $region42: #{_ffn_pallas.1} parent=1 // pred_check
      %p153 = pneg %p137
    $region43: #{_ffn_pallas.1} parent=1 // pred_check_branch
      %155 = sbr.rel (%p153) target = $region45
    $region44: #{_ffn_pallas.1} parent=1 // pred_region
      %s156 = smul.u32 0, 8
      %s157 = scalar_lea.vmem [#allocation3], %s156
      %v158 = vld [vmem:[%s157] sm:$0xff]
      %v159 = vld [vmem:[%s4] sm:$0x1]
      %v161 = vperm.slane %v159, 0
      %v163 = vadd.f32 %v158, %v161
      %164 = vst [vmem:[#allocation9] sm:$0xff] %v163
    $region45: #{_ffn_pallas.1} parent=1 // pred_fallthru
      _
    // Predicated region
    $region46: #{_ffn_pallas.1} parent=1 // pred_check
      _
    $region47: #{_ffn_pallas.1} parent=1 // pred_check_branch
      %166 = sbr.rel (0) target = $region49
    $region48: #{_ffn_pallas.1} parent=1 // pred_region
      %168 = vsyncadd [#allocation6], 0
      %s170 = sshll.u32 [#allocation9], 4
      %s171 = int_to_ptr.vmem [resolvable:$true] %s170
      %s172 = sshll.u32 %s5, 4
      %s173 = int_to_ptr.hbm [resolvable:$true] %s172
      %175 = dma.vmem_to_hbm [thread:$0]  %s171, 128, %s173, [#allocation6]
    $region49: #{_ffn_pallas.1} parent=1 // pred_fallthru
      _
    // Predicated region
    $region50: #{_ffn_pallas.1} parent=1 // pred_check
      _
    $region51: #{_ffn_pallas.1} parent=1 // pred_check_branch
      %177 = sbr.rel (0) target = $region53
    $region52: #{_ffn_pallas.1} parent=1 // pred_region
      %179 = dma.done [#allocation6], 128
    $region53: #{_ffn_pallas.1} parent=1 // pred_fallthru
      _
    %180 = vsyncpa [#allocation5], 1
    %181 = vsyncpa [#allocation8], 1
    %182 = vsyncpa [#allocation6], 1

</llo_original>
